<compile_context>
chip_gen: v5e
topology: v5e:2x2
jax: 0.10.0
libtpu: 0.0.40
codegen_flags: <defaults>
</compile_context>

<pallas_src>
import math

import jax
import jax.numpy as jnp
from jax.experimental import pallas as pl
from jax.experimental.pallas import tpu as pltpu


def _scaler_kernel(so_ref, x_ref, o_ref):
    # so_ref: SMEM (2,) float32 -> [scale, offset]
    scale = so_ref[0]
    offset = so_ref[1]
    # compute in f32, store in the output's native dtype
    o_ref[...] = (x_ref[...].astype(jnp.float32) * scale + offset).astype(o_ref.dtype)


def _choose_lanes(n, orig_shape, max_lanes):
    """Pick a lane width (multiple of 128) that divides n if at all possible."""
    # Prefer the native trailing dim when it is already lane-aligned: the
    # collapse of the leading dims is then (near-)free.
    if len(orig_shape) >= 2 and orig_shape[-1] % 128 == 0 and orig_shape[-1] <= max_lanes:
        return orig_shape[-1]
    # Otherwise: largest multiple of 128 that divides n (free bitcast, pad==0).
    best = 0
    lanes = 128
    while lanes <= max_lanes:
        if n % lanes == 0:
            best = lanes
        lanes += 128
    if best:
        return best
    # Fallback (n not divisible by 128): small tail pad of < 1024 elements.
    return 1024


def scaler_forward(x, min_val, max_val, *,
                   target_tile_bytes=4 * 1024 * 1024,
                   max_lanes=4096,
                   core_parallel=False):
    """Apply Scaler.forward to an arbitrarily shaped float tensor."""
    orig_shape = x.shape
    orig_dtype = x.dtype
    n = math.prod(orig_shape) if orig_shape else 1
    if n == 0:
        return x

    # --- scalar precompute (f32, preserves the 1e-4 clamp semantics) ---------
    min_f = jnp.float32(min_val)
    max_f = jnp.float32(max_val)
    denom = jnp.maximum(max_f - min_f, jnp.float32(1e-4))
    scale = jnp.float32(2.0) / denom
    offset = jnp.float32(-1.0) - min_f * scale
    scale_offset = jnp.stack([scale, offset])  # (2,) f32 -> SMEM

    # --- lane-dense 2D slab layout -------------------------------------------
    itemsize = jnp.dtype(orig_dtype).itemsize
    # packed-sublane multiple: 8 for 32-bit, 16 for 16-bit, 32 for 8-bit dtypes
    sub = max(8, 32 // itemsize)

    lanes = _choose_lanes(n, orig_shape, max_lanes)
    rows = pl.cdiv(n, lanes)
    pad = rows * lanes - n  # 0 for every 128-divisible element count

    if pad:
        xf = jnp.pad(x.reshape(-1), (0, pad))
        x2d = xf.reshape(rows, lanes)
    else:
        x2d = x.reshape(rows, lanes)

    # block rows: keep the tile ~target_tile_bytes in *bytes*, rounded to the
    # sublane-packing multiple; a single full-extent block for small inputs.
    target_rows = max(sub, (target_tile_bytes // (lanes * itemsize)) // sub * sub)
    block_rows = rows if rows <= target_rows else target_rows
    grid = (pl.cdiv(rows, block_rows),)  # ragged last block is masked by Pallas

    dim_sem = (pltpu.CORE_PARALLEL,) if core_parallel else ("parallel",)
    compiler_params = pltpu.CompilerParams(
        dimension_semantics=dim_sem,
        vmem_limit_bytes=32 * 1024 * 1024,
        # Only relevant in the rare pad fallback: let XLA fuse the pad into
        # the pallas_call operand instead of materializing an extra HBM pass.
        allow_input_fusion=[False, True] if pad else None,
    )

    out2d = pl.pallas_call(
        _scaler_kernel,
        out_shape=jax.ShapeDtypeStruct((rows, lanes), orig_dtype),
        grid=grid,
        in_specs=[
            pl.BlockSpec(memory_space=pltpu.SMEM),                # [scale, offset]
            pl.BlockSpec((block_rows, lanes), lambda i: (i, 0)),  # x tile
        ],
        out_specs=pl.BlockSpec((block_rows, lanes), lambda i: (i, 0)),
        compiler_params=compiler_params,
        cost_estimate=pl.CostEstimate(
            flops=2 * n,
            transcendentals=0,
            bytes_accessed=2 * n * itemsize,
        ),
    )(scale_offset, x2d)

    if pad:
        return out2d.reshape(-1)[:n].reshape(orig_shape)
    return out2d.reshape(orig_shape)


if __name__ == "__main__":
    # Deterministic buffer init. The module defaults to (inf, -inf), which is a
    # degenerate "unfitted" state; we pick concrete fitted values instead.
    min_val = -2.5
    max_val = 3.5

    key = jax.random.PRNGKey(0)
    # NCHW input consistent with a conv-style pipeline.
    x = jax.random.normal(key, (2, 4, 16, 16), dtype=jnp.float32)

    out = scaler_forward(x, min_val, max_val)
    out = jax.block_until_ready(out)

    # Pure-JAX reference check (same formula as the PyTorch forward).
    denom = max(max_val - min_val, 1e-4)
    ref = (x - min_val) / denom * 2.0 - 1.0
    assert out.shape == x.shape and out.dtype == x.dtype
    assert jnp.allclose(out, ref, atol=1e-5, rtol=1e-5)

    print("KERNEL_OK")
</pallas_src>

<mosaic_0001>
module attributes {stable_mosaic.version = 11 : i64} {
  func.func @_scaler_kernel(%arg0: i32, %arg1: memref<2xf32, #tpu.memory_space<smem>>, %arg2: memref<1x2048xf32, #tpu.memory_space<vmem>>, %arg3: memref<1x2048xf32, #tpu.memory_space<vmem>>) attributes {dimension_semantics = [#tpu.dimension_semantics<parallel>], iteration_bounds = array<i64: 1>, scalar_prefetch = 0 : i64, scratch_operands = 0 : i64, tpu.core_type = #tpu.core_type<tc>, window_params = [{transform_indices = @transform_0, window_bounds = array<i64: 2>}, {transform_indices = @transform_1, window_bounds = array<i64: 1, 2048>}, {transform_indices = @transform_2, window_bounds = array<i64: 1, 2048>}]} {
    %c0 = arith.constant 0 : index
    %0 = memref.load %arg1[%c0] : memref<2xf32, #tpu.memory_space<smem>>
    %c1 = arith.constant 1 : index
    %1 = memref.load %arg1[%c1] : memref<2xf32, #tpu.memory_space<smem>>
    %c0_0 = arith.constant 0 : index
    %c0_1 = arith.constant 0 : index
    %2 = vector.load %arg2[%c0_0, %c0_1] : memref<1x2048xf32, #tpu.memory_space<vmem>>, vector<1x2048xf32>
    %3 = vector.broadcast %0 : f32 to vector<1x2048xf32>
    %4 = arith.mulf %2, %3 : vector<1x2048xf32>
    %5 = vector.broadcast %1 : f32 to vector<1x2048xf32>
    %6 = arith.addf %4, %5 : vector<1x2048xf32>
    %c0_2 = arith.constant 0 : index
    %c0_3 = arith.constant 0 : index
    %7 = vector.load %arg3[%c0_2, %c0_3] : memref<1x2048xf32, #tpu.memory_space<vmem>>, vector<1x2048xf32>
    tpu.vector_store %arg3[%c0_2, %c0_3], %6 {strides = array<i32>} : memref<1x2048xf32, #tpu.memory_space<vmem>>, vector<1x2048xf32>,
    return
  }
  func.func @transform_0(%arg0: i32) -> i32 {
    %c0_i32 = arith.constant 0 : i32
    %c0_i32_0 = arith.constant 0 : i32
    return %c0_i32 : i32
  }
  func.func @transform_1(%arg0: i32) -> (i32, i32) {
    %c0_i32 = arith.constant 0 : i32
    %c0_i32_0 = arith.constant 0 : i32
    return %arg0, %c0_i32 : i32, i32
  }
  func.func @transform_2(%arg0: i32) -> (i32, i32) {
    %c0_i32 = arith.constant 0 : i32
    %c0_i32_0 = arith.constant 0 : i32
    return %arg0, %c0_i32 : i32, i32
  }
}

</mosaic_0001>

<llo_original>
// kernel: tpu_custom_call.1
$region0: #{tpu_custom_call.1}
  #allocation0 [shape = 'u32[]', space=smem, size = 0x4, offset = 0x4, fixed_abs, tag = 'smem constant byte address 0x4 - core index']
  #allocation1 [shape = 'u32[72,128]{1,0:T(1,128)}', space=vmem, size = 0x9000, scoped, tag = 'internal scratch']
  %s0 = inlined_call_operand.hbm [shape: f32[2], index: 0, kind: input, shape index: {}]
  %s1 = inlined_call_operand.hbm [shape: f32[1,2048], index: 1, kind: input, shape index: {}]
  %s2 = inlined_call_operand.hbm [shape: f32[1,2048], index: 2, kind: output, shape index: {}]
  %s3 = sld [smem:[#allocation0]]
  $region26: #{tpu_custom_call.1} parent=0
    _
  %s5 = ssub.s32 1, %s3
  %s6 = scalar_select 0, %s5, %s3
  $region1: #{tpu_custom_call.1} parent=0
    #allocation2 [shape = 'u8[512]{0}', space=smem, size = 0x200, scoped, tag = 'input window, operand 0, single buffered']
    #allocation3 [shape = 's32[1]{0}', space=sflag, size = 0x4, scoped, tag = 'scoped memory for tpu_custom_call.1']
    #allocation4 [shape = 's32[1]{0}', space=sflag, size = 0x4, scoped, tag = 'scoped memory for tpu_custom_call.1']
    #allocation5 [shape = 's32[1]{0}', space=sflag, size = 0x4, scoped, tag = 'scoped memory for tpu_custom_call.1']
    #allocation6 [shape = 'u8[8192]{0}', space=vmem, size = 0x2000, scoped, tag = 'input window, operand 1, single buffered']
    #allocation7 [shape = 'u8[8192]{0}', space=vmem, size = 0x2000, scoped, tag = 'output window, operand 0, single buffered']
    %7 = vsyncpa [#allocation5], 0
    %8 = vsyncpa [#allocation3], 0
    %9 = vsyncpa [#allocation4], 0
    // Predicated region
    $region2: #{tpu_custom_call.1} parent=1 // pred_check
      _
    $region3: #{tpu_custom_call.1} parent=1 // pred_check_branch
      %11 = sbr.rel (0) target = $region5
    $region4: #{tpu_custom_call.1} parent=1 // pred_region
      %13 = vsyncadd [#allocation5], 0
      %s15 = sshll.u32 %s0, 4
      %s16 = int_to_ptr.hbm [resolvable:$true] %s15
      %18 = dma.hbm_to_smem %s16, 16, [#allocation2], [#allocation5]
    $region5: #{tpu_custom_call.1} parent=1 // pred_fallthru
      _
    // Predicated region
    $region6: #{tpu_custom_call.1} parent=1 // pred_check
      _
    $region7: #{tpu_custom_call.1} parent=1 // pred_check_branch
      %20 = sbr.rel (0) target = $region9
    $region8: #{tpu_custom_call.1} parent=1 // pred_region
      %22 = vsyncadd [#allocation3], 0
      %s24 = sshll.u32 %s1, 4
      %s25 = int_to_ptr.hbm [resolvable:$true] %s24
      %s26 = sshll.u32 [#allocation6], 4
      %s27 = int_to_ptr.vmem [resolvable:$true] %s26
      %29 = dma.hbm_to_vmem [thread:$0]  %s25, 256, %s27, [#allocation3]
    $region9: #{tpu_custom_call.1} parent=1 // pred_fallthru
      _
    // Predicated region
    $region10: #{tpu_custom_call.1} parent=1 // pred_check
      _
    $region11: #{tpu_custom_call.1} parent=1 // pred_check_branch
      %31 = sbr.rel (0) target = $region13
    $region12: #{tpu_custom_call.1} parent=1 // pred_region
      %33 = dma.done [#allocation5], 16
    $region13: #{tpu_custom_call.1} parent=1 // pred_fallthru
      _
    // Predicated region
    $region14: #{tpu_custom_call.1} parent=1 // pred_check
      _
    $region15: #{tpu_custom_call.1} parent=1 // pred_check_branch
      %35 = sbr.rel (0) target = $region17
    $region16: #{tpu_custom_call.1} parent=1 // pred_region
      %37 = dma.done [#allocation3], 256
    $region17: #{tpu_custom_call.1} parent=1 // pred_fallthru
      _
    %38 = sfence
    %s39 = sld [smem:[#allocation2]]
    %s40 = sld [smem:[#allocation2 + $0x1]]
    %v41 = vld [vmem:[#allocation6] sm:$0xff]
    %v42 = vld [vmem:[#allocation6 + $0x8] sm:$0xff]
    %v43 = vstv %s39
    %v44 = vmul.f32 %v41, %v43
    %v45 = vmul.f32 %v42, %v43
    %v46 = vstv %s40
    %v47 = vadd.f32 %v44, %v46
    %v48 = vadd.f32 %v45, %v46
    %49 = vst [vmem:[#allocation7] sm:$0xff] %v47
    %50 = vst [vmem:[#allocation7 + $0x8] sm:$0xff] %v48
    // Predicated region
    $region18: #{tpu_custom_call.1} parent=1 // pred_check
      _
    $region19: #{tpu_custom_call.1} parent=1 // pred_check_branch
      %52 = sbr.rel (0) target = $region21
    $region20: #{tpu_custom_call.1} parent=1 // pred_region
      %54 = vsyncadd [#allocation4], 0
      %s56 = sshll.u32 [#allocation7], 4
      %s57 = int_to_ptr.vmem [resolvable:$true] %s56
      %s58 = sshll.u32 %s2, 4
      %s59 = int_to_ptr.hbm [resolvable:$true] %s58
      %61 = dma.vmem_to_hbm [thread:$0]  %s57, 256, %s59, [#allocation4]
    $region21: #{tpu_custom_call.1} parent=1 // pred_fallthru
      _
    // Predicated region
    $region22: #{tpu_custom_call.1} parent=1 // pred_check
      _
    $region23: #{tpu_custom_call.1} parent=1 // pred_check_branch
      %63 = sbr.rel (0) target = $region25
    $region24: #{tpu_custom_call.1} parent=1 // pred_region
      %65 = dma.done [#allocation4], 256
    $region25: #{tpu_custom_call.1} parent=1 // pred_fallthru
      _
    %66 = vsyncpa [#allocation3], 1
    %67 = vsyncpa [#allocation4], 1
    %68 = vsyncpa [#allocation5], 1

</llo_original>
